<compile_context>
chip_gen: v6e
topology: v6e:2x2x1
jax: 0.10.0
libtpu: 0.0.40
codegen_flags: <defaults>
</compile_context>

<pallas_src>
import jax
import jax.numpy as jnp
from jax.experimental import pallas as pl
from jax.experimental.pallas import tpu as pltpu

INPUT_DIM = 10
PRE_OUTPUT_DIM = 100

_SMALL_BATCH_MAX = 2048   # gridless single-invocation path up to this many rows
_TB_MAX = 8192            # max rows per grid step (f32 output block ~3.2 MiB)


def _reg_kernel(x_ref, w_ref, b_ref, o_ref):
    # MXU matmul (f32 accumulate); bias add + ReLU on the VPU.
    acc = jnp.dot(x_ref[...], w_ref[...], preferred_element_type=jnp.float32)
    o_ref[...] = jnp.maximum(acc + b_ref[...], 0.0).astype(o_ref.dtype)


def _cost_estimate(batch, in_dim, out_dim):
    itemsize = 4  # f32
    return pl.CostEstimate(
        flops=2 * batch * in_dim * out_dim,
        transcendentals=0,
        bytes_accessed=itemsize * (batch * in_dim       # x
                                   + in_dim * out_dim   # W
                                   + out_dim            # b
                                   + batch * out_dim),  # y
    )


def _forward_small(x, w, b2d):
    """Gridless single-invocation kernel: whole problem resident in VMEM."""
    batch, in_dim = x.shape
    out_dim = w.shape[1]
    return pl.pallas_call(
        _reg_kernel,
        out_shape=jax.ShapeDtypeStruct((batch, out_dim), x.dtype),
        in_specs=[
            pl.BlockSpec(memory_space=pltpu.MemorySpace.VMEM),
            pl.BlockSpec(memory_space=pltpu.MemorySpace.VMEM),
            pl.BlockSpec(memory_space=pltpu.MemorySpace.VMEM),
        ],
        out_specs=pl.BlockSpec(memory_space=pltpu.MemorySpace.VMEM),
        cost_estimate=_cost_estimate(batch, in_dim, out_dim),
    )(x, w, b2d)


def _forward_tiled(x, w, b2d):
    """Batch-tiled path for large B: grid over batch, W/b replicated in VMEM."""
    batch, in_dim = x.shape
    out_dim = w.shape[1]
    # At least 2 grid steps so ("parallel",) can shard the batch across both
    # TensorCores on v7x; cap the tile at _TB_MAX rows so the double-buffered
    # output block (~6.3 MiB at tb=8192) stays within the scoped-VMEM default
    # on every generation (v5e 16 MiB, v6e/v7x 32 MiB).
    n_steps = max(2, pl.cdiv(batch, _TB_MAX))
    tb = ((pl.cdiv(batch, n_steps) + 7) // 8) * 8     # sublane multiple of 8
    grid = (pl.cdiv(batch, tb),)                      # ragged last block is OK
    return pl.pallas_call(
        _reg_kernel,
        out_shape=jax.ShapeDtypeStruct((batch, out_dim), x.dtype),
        grid=grid,
        in_specs=[
            pl.BlockSpec((tb, in_dim), lambda i: (i, 0)),
            pl.BlockSpec((in_dim, out_dim), lambda i: (0, 0)),   # replicated
            pl.BlockSpec((1, out_dim), lambda i: (0, 0)),        # replicated
        ],
        out_specs=pl.BlockSpec((tb, out_dim), lambda i: (i, 0)),
        compiler_params=pltpu.CompilerParams(
            dimension_semantics=("parallel",)),
        cost_estimate=_cost_estimate(batch, in_dim, out_dim),
    )(x, w, b2d)


def reg_model_forward(x, w, b):
    """Forward pass of RegModel: relu(x @ w + b).

    x: (B, input_dim) f32
    w: (input_dim, out_dim) f32   (transpose of the PyTorch weight)
    b: (out_dim,) or (1, out_dim) f32
    returns: (B, out_dim) f32
    """
    b2d = b.reshape(1, -1)   # metadata-only reshape; no HBM round-trip
    if x.shape[0] <= _SMALL_BATCH_MAX:
        return _forward_small(x, w, b2d)
    return _forward_tiled(x, w, b2d)


def _init_params(key, input_dim, output_dim):
    # Deterministic init mimicking nn.Linear default (uniform +/- 1/sqrt(fan_in)).
    k_w, k_b = jax.random.split(key)
    bound = 1.0 / jnp.sqrt(float(input_dim))
    # PyTorch stores weight as (out, in); we store the transpose (in, out).
    w = jax.random.uniform(k_w, (input_dim, output_dim), jnp.float32,
                           minval=-bound, maxval=bound)
    b = jax.random.uniform(k_b, (output_dim,), jnp.float32,
                           minval=-bound, maxval=bound)
    return w, b


if __name__ == "__main__":
    key = jax.random.PRNGKey(0)
    k_x, k_p, k_big = jax.random.split(key, 3)

    w, b = _init_params(k_p, INPUT_DIM, PRE_OUTPUT_DIM)

    # Small batch: gridless path.
    batch = 8
    x = jax.random.normal(k_x, (batch, INPUT_DIM), jnp.float32)
    y = jax.block_until_ready(reg_model_forward(x, w, b))
    y_ref = jnp.maximum(x @ w + b[None, :], 0.0)
    assert y.shape == (batch, PRE_OUTPUT_DIM)
    assert jnp.allclose(y, y_ref, atol=1e-5, rtol=1e-5)

    # Larger batch: tiled megacore-parallel path with a ragged last block
    # (no batch padding, no post-kernel slice).
    big_batch = 4104
    x_big = jax.random.normal(k_big, (big_batch, INPUT_DIM), jnp.float32)
    y_big = jax.block_until_ready(reg_model_forward(x_big, w, b))
    y_big_ref = jnp.maximum(x_big @ w + b[None, :], 0.0)
    assert y_big.shape == (big_batch, PRE_OUTPUT_DIM)
    assert jnp.allclose(y_big, y_big_ref, atol=1e-5, rtol=1e-5)

    print("KERNEL_OK")
</pallas_src>

<mosaic_0001>
module attributes {stable_mosaic.version = 11 : i64} {
  func.func @_reg_kernel(%arg0: memref<8x10xf32, #tpu.memory_space<vmem>>, %arg1: memref<10x100xf32, #tpu.memory_space<vmem>>, %arg2: memref<1x100xf32, #tpu.memory_space<vmem>>, %arg3: memref<8x100xf32, #tpu.memory_space<vmem>>) attributes {dimension_semantics = [], scalar_prefetch = 0 : i64, scratch_operands = 0 : i64, tpu.core_type = #tpu.core_type<tc>} {
    %c0 = arith.constant 0 : index
    %c0_0 = arith.constant 0 : index
    %0 = vector.load %arg0[%c0, %c0_0] : memref<8x10xf32, #tpu.memory_space<vmem>>, vector<8x10xf32>
    %c0_1 = arith.constant 0 : index
    %c0_2 = arith.constant 0 : index
    %1 = vector.load %arg1[%c0_1, %c0_2] : memref<10x100xf32, #tpu.memory_space<vmem>>, vector<10x100xf32>
    %cst = arith.constant dense<0.000000e+00> : vector<8x100xf32>
    %2 = tpu.matmul %0, %1, %cst {dimension_numbers = #tpu.dot_dimension_numbers<[1], [0], [0], [1], [0, 0, 1, 1], [], []>} : vector<8x10xf32>, vector<10x100xf32>, vector<8x100xf32> -> vector<8x100xf32>
    %c0_3 = arith.constant 0 : index
    %c0_4 = arith.constant 0 : index
    %3 = vector.load %arg2[%c0_3, %c0_4] : memref<1x100xf32, #tpu.memory_space<vmem>>, vector<1x100xf32>
    %4 = vector.broadcast %3 : vector<1x100xf32> to vector<8x100xf32>
    %5 = arith.addf %2, %4 : vector<8x100xf32>
    %cst_5 = arith.constant 0.000000e+00 : f32
    %6 = vector.broadcast %cst_5 : f32 to vector<8x100xf32>
    %7 = arith.maximumf %5, %6 : vector<8x100xf32>
    %c0_6 = arith.constant 0 : index
    %c0_7 = arith.constant 0 : index
    %8 = vector.load %arg3[%c0_6, %c0_7] : memref<8x100xf32, #tpu.memory_space<vmem>>, vector<8x100xf32>
    tpu.vector_store %arg3[%c0_6, %c0_7], %7 {strides = array<i32>} : memref<8x100xf32, #tpu.memory_space<vmem>>, vector<8x100xf32>,
    return
  }
}

</mosaic_0001>

<llo_original>
// kernel: tpu_custom_call.1
$region0: #{tpu_custom_call.1}
  #allocation0 [shape = 'u32[]', space=smem, size = 0x4, offset = 0x4, fixed_abs, tag = 'smem constant byte address 0x4 - core index']
  #allocation1 [shape = 'u32[144,128]{1,0:T(1,128)}', space=vmem, size = 0x12000, scoped, tag = 'internal scratch']
  %s0 = inlined_call_operand.hbm [shape: f32[8,10], index: 0, kind: input, shape index: {}]
  %s1 = inlined_call_operand.hbm [shape: f32[10,100], index: 1, kind: input, shape index: {}]
  %s2 = inlined_call_operand.vmem [shape: f32[1,100], index: 2, kind: input, shape index: {}]
  %s3 = inlined_call_operand.hbm [shape: f32[8,100], index: 3, kind: output, shape index: {}]
  %s4 = sld [smem:[#allocation0]]
  $region30: #{tpu_custom_call.1} parent=0
    _
  %s6 = ssub.s32 1, %s4
  %s7 = scalar_select 0, %s6, %s4
  $region1: #{tpu_custom_call.1} parent=0
    #allocation2 [shape = 'u8[4096]{0}', space=vmem, size = 0x1000, scoped, tag = 'input window, operand 0, single buffered']
    #allocation3 [shape = 's32[1]{0}', space=sflag, size = 0x4, scoped, tag = 'scoped memory for tpu_custom_call.1']
    #allocation4 [shape = 's32[1]{0}', space=sflag, size = 0x4, scoped, tag = 'scoped memory for tpu_custom_call.1']
    #allocation5 [shape = 'u8[8192]{0}', space=vmem, size = 0x2000, scoped, tag = 'input window, operand 1, single buffered']
    #allocation6 [shape = 's32[1]{0}', space=sflag, size = 0x4, scoped, tag = 'scoped memory for tpu_custom_call.1']
    #allocation7 [shape = 'u8[4096]{0}', space=vmem, size = 0x1000, scoped, tag = 'output window, operand 0, single buffered']
    %8 = vsyncpa [#allocation3], 0
    %9 = vsyncpa [#allocation6], 0
    %10 = vsyncpa [#allocation4], 0
    // Predicated region
    $region2: #{tpu_custom_call.1} parent=1 // pred_check
      _
    $region3: #{tpu_custom_call.1} parent=1 // pred_check_branch
      %12 = sbr.rel (0) target = $region5
    $region4: #{tpu_custom_call.1} parent=1 // pred_region
      %s14 = ssub.s32 128, 128
      %15 = vsyncadd [#allocation3], %s14
      %s17 = sshll.u32 [#allocation2], 4
      %s18 = int_to_ptr.vmem [resolvable:$true] %s17
      %20 = dma.hbm_to_vmem [thread:$0]  %s0, 128, %s18, [#allocation3]
    $region5: #{tpu_custom_call.1} parent=1 // pred_fallthru
      _
    // Predicated region
    $region6: #{tpu_custom_call.1} parent=1 // pred_check
      _
    $region7: #{tpu_custom_call.1} parent=1 // pred_check_branch
      %22 = sbr.rel (0) target = $region9
    $region8: #{tpu_custom_call.1} parent=1 // pred_region
      %s24 = ssub.s32 256, 256
      %25 = vsyncadd [#allocation6], %s24
      %s26 = sshll.u32 [#allocation5], 4
      %s27 = int_to_ptr.vmem [resolvable:$true] %s26
      %32 = dma.hbm_to_vmem [thread:$0]  %s1, 256, %s27, [#allocation6], 128, 128, 8
    $region9: #{tpu_custom_call.1} parent=1 // pred_fallthru
      _
    // Predicated region
    $region10: #{tpu_custom_call.1} parent=1 // pred_check
      _
    $region11: #{tpu_custom_call.1} parent=1 // pred_check_branch
      %34 = sbr.rel (0) target = $region13
    $region12: #{tpu_custom_call.1} parent=1 // pred_region
      _
    $region13: #{tpu_custom_call.1} parent=1 // pred_fallthru
      _
    // Predicated region
    $region14: #{tpu_custom_call.1} parent=1 // pred_check
      _
    $region15: #{tpu_custom_call.1} parent=1 // pred_check_branch
      %36 = sbr.rel (0) target = $region17
    $region16: #{tpu_custom_call.1} parent=1 // pred_region
      %37 = dma.done [#allocation3], 128
    $region17: #{tpu_custom_call.1} parent=1 // pred_fallthru
      _
    // Predicated region
    $region18: #{tpu_custom_call.1} parent=1 // pred_check
      _
    $region19: #{tpu_custom_call.1} parent=1 // pred_check_branch
      %39 = sbr.rel (0) target = $region21
    $region20: #{tpu_custom_call.1} parent=1 // pred_region
      %40 = dma.done [#allocation6], 256
    $region21: #{tpu_custom_call.1} parent=1 // pred_fallthru
      _
    %v41 = vld [vmem:[#allocation2] sm:$0xff]
    %v42 = vld [vmem:[#allocation5] sm:$0xff]
    %v43 = vld [vmem:[#allocation5 + $0x8] sm:$0x3]
    %v44 = vld [vmem:[%s2] sm:$0x1]
    %v46 = vlaneseq
    %v47 = vshrl.u32 %v46, 7
    %v48 = vsub.s32 0, %v47
    %v49 = vrot.slane %v44, %v48
    %vm51 = vcmask 80896
    %v53 = vsel %vm51, %v41, 0
    %vm55 = vcmask 1041408
    %v57 = vsel %vm55, %v43, 0
    %59 = vmatprep.subr.mxu0 0.0
    %60 = vmatpush1.msra.mxu0 0.0
    %61 = vmatprep.subr.mxu0 0.0
    %62 = vmatpush1.msra.mxu0 0.0
    %63 = vmatprep.subr.mxu0 0.0
    %64 = vmatpush1.msra.mxu0 0.0
    %65 = vmatprep.subr.mxu0 0.0
    %66 = vmatpush1.msra.mxu0 0.0
    %67 = vmatprep.subr.mxu0 0.0
    %68 = vmatpush1.msra.mxu0 0.0
    %69 = vmatprep.subr.mxu0 0.0
    %70 = vmatpush1.msra.mxu0 0.0
    %71 = vmatprep.subr.mxu0 0.0
    %72 = vmatpush1.msra.mxu0 0.0
    %73 = vmatprep.subr.mxu0 0.0
    %74 = vmatpush1.msra.mxu0 0.0
    %75 = vmatprep.subr.mxu0 0.0
    %76 = vmatpush1.msra.mxu0 0.0
    %77 = vmatprep.subr.mxu0 0.0
    %78 = vmatpush1.msra.mxu0 0.0
    %79 = vmatprep.subr.mxu0 0.0
    %80 = vmatpush1.msra.mxu0 0.0
    %81 = vmatprep.subr.mxu0 0.0
    %82 = vmatpush1.msra.mxu0 0.0
    %83 = vmatprep.subr.mxu0 0.0
    %84 = vmatpush1.msra.mxu0 0.0
    %85 = vmatprep.subr.mxu0 0.0
    %86 = vmatpush1.msra.mxu0 0.0
    %87 = vmatprep.subr.mxu0 0.0
    %88 = vmatpush1.msra.mxu0 %v57
    %89 = vmatprep.subr.mxu0 0.0
    %90 = vmatpush1.msra.mxu0 %v42
    %91 = vmatprep.subr.mxu0 0.0
    %92 = vmatpush2.msra.mxu0 0.0
    %93 = vmatprep.subr.mxu0 0.0
    %94 = vmatpush2.msra.mxu0 0.0
    %95 = vmatprep.subr.mxu0 0.0
    %96 = vmatpush2.msra.mxu0 0.0
    %97 = vmatprep.subr.mxu0 0.0
    %98 = vmatpush2.msra.mxu0 0.0
    %99 = vmatprep.subr.mxu0 0.0
    %100 = vmatpush2.msra.mxu0 0.0
    %101 = vmatprep.subr.mxu0 0.0
    %102 = vmatpush2.msra.mxu0 0.0
    %103 = vmatprep.subr.mxu0 0.0
    %104 = vmatpush2.msra.mxu0 0.0
    %105 = vmatprep.subr.mxu0 0.0
    %106 = vmatpush2.msra.mxu0 0.0
    %107 = vmatprep.subr.mxu0 0.0
    %108 = vmatpush2.msra.mxu0 0.0
    %109 = vmatprep.subr.mxu0 0.0
    %110 = vmatpush2.msra.mxu0 0.0
    %111 = vmatprep.subr.mxu0 0.0
    %112 = vmatpush2.msra.mxu0 0.0
    %113 = vmatprep.subr.mxu0 0.0
    %114 = vmatpush2.msra.mxu0 0.0
    %115 = vmatprep.subr.mxu0 0.0
    %116 = vmatpush2.msra.mxu0 0.0
    %117 = vmatprep.subr.mxu0 0.0
    %118 = vmatpush2.msra.mxu0 0.0
    %119 = vmatprep.subr.mxu0 0.0
    %120 = vmatpush2.msra.mxu0 0.0
    %121 = vmatprep.subr.mxu0 0.0
    %122 = vmatpush2.msra.mxu0 0.0
    %123 = vmatprep.mubr.f32.mxu0 0.0
    %124 = vmatmul.mubr.f32.gmra.mxu0 %v53
    %v125 = vpop.f32.mrf.mxu0
    %v126 = vadd.f32 %v49, %v125
    %v127 = vpop.f32.mrf.mxu0
    %128 = vdwg.mxu0
    %v129 = vmax.f32 %v126, 0.0
    %vm130 = vcmask 818176
    %131 = vst.msk [vmem:[#allocation7] sm:$0xff] %vm130, %v129
    // Predicated region
    $region22: #{tpu_custom_call.1} parent=1 // pred_check
      _
    $region23: #{tpu_custom_call.1} parent=1 // pred_check_branch
      %133 = sbr.rel (0) target = $region25
    $region24: #{tpu_custom_call.1} parent=1 // pred_region
      %s135 = ssub.s32 128, 128
      %136 = vsyncadd [#allocation4], %s135
      %s138 = sshll.u32 [#allocation7], 4
      %s139 = int_to_ptr.vmem [resolvable:$true] %s138
      %141 = dma.vmem_to_hbm [thread:$0]  %s139, 128, %s3, [#allocation4]
    $region25: #{tpu_custom_call.1} parent=1 // pred_fallthru
      _
    // Predicated region
    $region26: #{tpu_custom_call.1} parent=1 // pred_check
      _
    $region27: #{tpu_custom_call.1} parent=1 // pred_check_branch
      %143 = sbr.rel (0) target = $region29
    $region28: #{tpu_custom_call.1} parent=1 // pred_region
      %144 = dma.done [#allocation4], 128
    $region29: #{tpu_custom_call.1} parent=1 // pred_fallthru
      _
    %145 = vsyncpa [#allocation3], 1
    %146 = vsyncpa [#allocation6], 1
    %147 = vsyncpa [#allocation4], 1

</llo_original>
